<compile_context>
chip_gen: v7x
topology: tpu7x:2x2x1
jax: 0.10.0
libtpu: 0.0.40
codegen_flags: <defaults>
</compile_context>

<pallas_src>
import functools

import jax
import jax.numpy as jnp
from jax.experimental import pallas as pl
from jax.experimental.pallas import tpu as pltpu


def _round_up(x, m):
    return (x + m - 1) // m * m


def _cdiv(a, b):
    return (a + b - 1) // b


def _choose_tile_n(n, c, itemsize):
    """Batch tile (multiple of 128) sized from a VMEM budget.

    Rough per-lane VMEM use inside the kernel:
      - double-buffered (C, TILE_N) logits block (sublanes padded to 8),
      - a handful of live f32 (C, TILE_N) temporaries (softmax / focal chain),
      - ~a dozen (1, TILE_N) rows (max, lse, normalizor, ...), sublane-padded.
    The budget keeps the working set comfortably under the scoped-VMEM limit on
    every generation (v7x: 32 MiB default / 64 MiB physical) while letting the
    tile grow to tens of thousands of lanes so the ~0.35 us per-grid-step
    overhead becomes noise.
    """
    c_pad = _round_up(c, 8)
    per_lane = 2 * c_pad * itemsize + 6 * c_pad * 4 + 12 * 8 * 4
    budget = 24 * 1024 * 1024
    t = budget // max(1, per_lane)
    t = max(128, min(int(t), 32768))
    t = (t // 128) * 128
    if n > 128:
        # Keep at least two grid steps so the "parallel" axis can be sharded
        # across both TensorCores on v7x.
        t = min(t, _round_up(_cdiv(n, 2), 128))
    t = min(t, _round_up(n, 128))
    return max(128, (t // 128) * 128)


def _pow_weight(base, gamma):
    """(base)**gamma with an integer-gamma fast path (VALU multiplies, no EUP pow)."""
    g = float(gamma)
    if g == 0.0:
        return jnp.ones_like(base)
    if g.is_integer() and 1.0 <= g <= 8.0:
        out = base
        for _ in range(int(g) - 1):
            out = out * base
        return out
    return base ** gamma


def _nfl_kernel(logits_ref, target_ref, out_ref, *, gamma, scale, n_valid, tile_n):
    # logits_ref: (C, TILE_N) — classes on sublanes, samples on the 128-lane axis.
    # target_ref: (1, TILE_N) int32 class indices.
    # out_ref   : (1, 1, 128) — this tile's partial loss sum, replicated over lanes.
    x = logits_ref[...].astype(jnp.float32)
    t = target_ref[...]

    # Numerically stable log-softmax pieces over the class axis (axis 0).
    m = jnp.max(x, axis=0, keepdims=True)
    z = x - m
    ez = jnp.exp(z)                                        # the only full-size exp
    sum_ez = jnp.sum(ez, axis=0, keepdims=True)
    lse = jnp.log(sum_ez)                                  # (1, T)

    # Gather z at the target class with a one-hot select + sublane reduce.
    cls = jax.lax.broadcasted_iota(jnp.int32, x.shape, 0)
    onehot = cls == t                                      # (C, T) bool
    z_t = jnp.sum(jnp.where(onehot, z, 0.0), axis=0, keepdims=True)
    logpt_t = z_t - lse                                    # (1, T)

    if gamma == 0:
        # (1 - pt)^0 == 1 exactly (matches torch); no pt is needed anywhere.
        normalizor = jnp.sum(lse - z, axis=0, keepdims=True)   # sum_c(-logpt_c)
        loss = -logpt_t
    else:
        logpt = z - lse                                    # (C, T)
        pt_all = ez * pl.reciprocal(sum_ez, approx=False)  # reuse exp(z), no 2nd exp
        w_all = _pow_weight(1.0 - pt_all, gamma)
        normalizor = jnp.sum(-w_all * logpt, axis=0, keepdims=True)
        pt_t = jnp.sum(jnp.where(onehot, pt_all, 0.0), axis=0, keepdims=True)
        loss = -_pow_weight(1.0 - pt_t, gamma) * logpt_t

    loss = (scale * loss) * pl.reciprocal(normalizor, approx=False)

    # Ragged tail: columns beyond the true batch size hold garbage (the input
    # is NOT padded); drop them with a select so NaN/Inf cannot propagate.
    col = jax.lax.broadcasted_iota(jnp.int32, loss.shape, 1) + pl.program_id(0) * tile_n
    masked = jnp.where(col < n_valid, loss, 0.0)

    partial = jnp.sum(masked, axis=1, keepdims=True)       # (1, 1)
    out_ref[...] = jnp.broadcast_to(partial.reshape(1, 1, 1), (1, 1, 128))


def normalized_focal_loss_class_major(logits_cn, target, *, scale=1.0, gamma=0,
                                      size_average=True, tile_n=None):
    """NormalizedFocalLoss on class-major logits (C, N): no extra HBM copies.

    logits_cn: (C, N) float array (f32 or bf16); target: (N,) int class indices.
    Returns a float32 scalar.
    """
    c, n = logits_cn.shape
    itemsize = jnp.dtype(logits_cn.dtype).itemsize
    if tile_n is None:
        tile_n = _choose_tile_n(n, c, itemsize)
    tile_n = max(128, (int(tile_n) // 128) * 128)
    num_tiles = _cdiv(n, tile_n)

    target_row = target.astype(jnp.int32).reshape(1, n)

    kernel = functools.partial(_nfl_kernel, gamma=gamma, scale=scale,
                               n_valid=n, tile_n=tile_n)

    cost = pl.CostEstimate(
        flops=int(12 * n * c),
        transcendentals=int(n * (c + 2)),
        bytes_accessed=int(n * c * itemsize + n * 4 + num_tiles * 128 * 4),
    )

    partials = pl.pallas_call(
        kernel,
        out_shape=jax.ShapeDtypeStruct((num_tiles, 1, 128), jnp.float32),
        grid=(num_tiles,),
        in_specs=[
            pl.BlockSpec((c, tile_n), lambda i: (0, i)),   # class-major logits tile
            pl.BlockSpec((1, tile_n), lambda i: (0, i)),   # target tile
        ],
        out_specs=pl.BlockSpec((1, 1, 128), lambda i: (i, 0, 0)),
        compiler_params=pltpu.CompilerParams(
            dimension_semantics=("parallel",),             # v7x: shard tiles over TCs
            vmem_limit_bytes=48 * 1024 * 1024,
        ),
        cost_estimate=cost,
    )(logits_cn, target_row)

    total = jnp.sum(partials[:, 0, 0])                     # tiny (num_tiles,) sum
    if size_average:
        return total / jnp.float32(n)
    return total


def normalized_focal_loss(logits, target, *, scale=1.0, gamma=0,
                          size_average=True, tile_n=None):
    """Module-shaped entry point: logits (N, C), target (N,) -> f32 scalar.

    The single wrapper-side copy is the class-major transpose the lane-dense
    kernel layout needs; producers that can emit (C, N) directly (e.g. by
    transposing the classifier matmul's output spec) should call
    `normalized_focal_loss_class_major` and skip it entirely.
    """
    logits_cn = jnp.transpose(logits)
    return normalized_focal_loss_class_major(logits_cn, target, scale=scale,
                                             gamma=gamma,
                                             size_average=size_average,
                                             tile_n=tile_n)


def _reference(logits, target, *, scale=1.0, gamma=0, size_average=True):
    """Pure-JAX reference mirroring the PyTorch forward exactly."""
    logpt = jax.nn.log_softmax(logits.astype(jnp.float32), axis=1)
    w_all = jnp.ones_like(logpt) if gamma == 0 else (1.0 - jnp.exp(logpt)) ** gamma
    normalizor = jnp.sum(-w_all * logpt, axis=1)
    logpt_t = jnp.take_along_axis(logpt, target.reshape(-1, 1), axis=1).reshape(-1)
    pt = jnp.exp(logpt_t)
    w = jnp.ones_like(logpt_t) if gamma == 0 else (1.0 - pt) ** gamma
    loss = -w * logpt_t
    loss = scale * loss / normalizor
    return jnp.mean(loss) if size_average else jnp.sum(loss)


if __name__ == "__main__":
    # Deterministic small inputs consistent with the module (num_classes=10).
    N, C = 8, 10
    key = jax.random.PRNGKey(0)
    k_logits, k_target = jax.random.split(key)
    logits = jax.random.normal(k_logits, (N, C), dtype=jnp.float32)
    target = jax.random.randint(k_target, (N,), 0, C, dtype=jnp.int32)

    # Default module config: scale=1.0, gamma=0, size_average=True.
    loss = normalized_focal_loss(logits, target, scale=1.0, gamma=0)
    jax.block_until_ready(loss)
    ref = _reference(logits, target, scale=1.0, gamma=0)
    assert jnp.allclose(loss, ref, rtol=1e-5, atol=1e-6), (loss, ref)

    # Non-trivial focal exponent (integer-gamma fast path).
    loss_g2 = normalized_focal_loss(logits, target, scale=2.0, gamma=2)
    jax.block_until_ready(loss_g2)
    ref_g2 = _reference(logits, target, scale=2.0, gamma=2)
    assert jnp.allclose(loss_g2, ref_g2, rtol=1e-5, atol=1e-6), (loss_g2, ref_g2)

    # Multi-tile unpadded (ragged last block) batch, sum reduction, small tile.
    N2 = 300
    k2l, k2t = jax.random.split(jax.random.PRNGKey(1))
    logits2 = jax.random.normal(k2l, (N2, C), dtype=jnp.float32)
    target2 = jax.random.randint(k2t, (N2,), 0, C, dtype=jnp.int32)
    loss2 = normalized_focal_loss(logits2, target2, scale=1.0, gamma=2,
                                  size_average=False, tile_n=128)
    jax.block_until_ready(loss2)
    ref2 = _reference(logits2, target2, scale=1.0, gamma=2, size_average=False)
    assert jnp.allclose(loss2, ref2, rtol=1e-5, atol=1e-5), (loss2, ref2)

    # Zero-copy class-major path with bf16 logits (in-kernel math stays f32).
    logits2_cn_bf16 = jnp.transpose(logits2).astype(jnp.bfloat16)
    loss3 = normalized_focal_loss_class_major(logits2_cn_bf16, target2,
                                              scale=1.0, gamma=0)
    jax.block_until_ready(loss3)
    ref3 = _reference(jnp.transpose(logits2_cn_bf16).astype(jnp.float32), target2,
                      scale=1.0, gamma=0)
    assert jnp.allclose(loss3, ref3, rtol=1e-5, atol=1e-6), (loss3, ref3)

    print("KERNEL_OK")
</pallas_src>

<mosaic_0001>
module attributes {stable_mosaic.version = 11 : i64} {
  func.func @_nfl_kernel(%arg0: i32, %arg1: memref<10x128xf32, #tpu.memory_space<vmem>>, %arg2: memref<1x128xi32, #tpu.memory_space<vmem>>, %arg3: memref<1x1x128xf32, #tpu.memory_space<vmem>>) attributes {dimension_semantics = [#tpu.dimension_semantics<parallel>], iteration_bounds = array<i64: 1>, scalar_prefetch = 0 : i64, scratch_operands = 0 : i64, tpu.core_type = #tpu.core_type<tc>, window_params = [{transform_indices = @transform_0, window_bounds = array<i64: 10, 128>}, {transform_indices = @transform_1, window_bounds = array<i64: 1, 128>}, {transform_indices = @transform_2, window_bounds = array<i64: 1, 1, 128>}]} {
    %c0 = arith.constant 0 : index
    %c0_0 = arith.constant 0 : index
    %0 = vector.load %arg1[%c0, %c0_0] : memref<10x128xf32, #tpu.memory_space<vmem>>, vector<10x128xf32>
    %c0_1 = arith.constant 0 : index
    %c0_2 = arith.constant 0 : index
    %1 = vector.load %arg2[%c0_1, %c0_2] : memref<1x128xi32, #tpu.memory_space<vmem>>, vector<1x128xi32>
    %cst = arith.constant dense<0xFF800000> : vector<128xf32>
    %2 = vector.multi_reduction <maximumf>, %0, %cst [0] : vector<10x128xf32> to vector<128xf32>
    %3 = vector.shape_cast %2 : vector<128xf32> to vector<1x128xf32>
    %4 = vector.broadcast %3 : vector<1x128xf32> to vector<10x128xf32>
    %5 = arith.subf %0, %4 : vector<10x128xf32>
    %6 = math.exp %5 : vector<10x128xf32>
    %cst_3 = arith.constant dense<0.000000e+00> : vector<128xf32>
    %7 = vector.multi_reduction <add>, %6, %cst_3 [0] : vector<10x128xf32> to vector<128xf32>
    %8 = vector.shape_cast %7 : vector<128xf32> to vector<1x128xf32>
    %9 = math.log %8 : vector<1x128xf32>
    %10 = tpu.iota {dimensions = array<i32: 0>} : vector<10x128xi32>
    %11 = vector.broadcast %1 : vector<1x128xi32> to vector<10x128xi32>
    %12 = arith.cmpi eq, %10, %11 : vector<10x128xi32>
    %cst_4 = arith.constant 0.000000e+00 : f32
    %13 = vector.broadcast %cst_4 : f32 to vector<10x128xf32>
    %14 = arith.select %12, %5, %13 : vector<10x128xi1>, vector<10x128xf32>
    %cst_5 = arith.constant dense<0.000000e+00> : vector<128xf32>
    %15 = vector.multi_reduction <add>, %14, %cst_5 [0] : vector<10x128xf32> to vector<128xf32>
    %16 = vector.shape_cast %15 : vector<128xf32> to vector<1x128xf32>
    %17 = arith.subf %16, %9 : vector<1x128xf32>
    %18 = vector.broadcast %9 : vector<1x128xf32> to vector<10x128xf32>
    %19 = arith.subf %18, %5 : vector<10x128xf32>
    %cst_6 = arith.constant dense<0.000000e+00> : vector<128xf32>
    %20 = vector.multi_reduction <add>, %19, %cst_6 [0] : vector<10x128xf32> to vector<128xf32>
    %21 = vector.shape_cast %20 : vector<128xf32> to vector<1x128xf32>
    %cst_7 = arith.constant 0.000000e+00 : f32
    %22 = vector.broadcast %cst_7 : f32 to vector<1x128xf32>
    %23 = arith.subf %22, %17 : vector<1x128xf32>
    %cst_8 = arith.constant 1.000000e+00 : f32
    %24 = vector.broadcast %cst_8 : f32 to vector<1x128xf32>
    %25 = arith.mulf %24, %23 : vector<1x128xf32>
    %26 = tpu.reciprocal %21 : vector<1x128xf32> -> vector<1x128xf32>
    %27 = arith.mulf %25, %26 : vector<1x128xf32>
    %28 = tpu.iota {dimensions = array<i32: 1>} : vector<1x128xi32>
    %c128_i32 = arith.constant 128 : i32
    %29 = arith.muli %arg0, %c128_i32 : i32
    %30 = vector.broadcast %29 : i32 to vector<1x128xi32>
    %31 = arith.addi %28, %30 : vector<1x128xi32>
    %c8_i32 = arith.constant 8 : i32
    %32 = vector.broadcast %c8_i32 : i32 to vector<1x128xi32>
    %33 = arith.cmpi slt, %31, %32 : vector<1x128xi32>
    %cst_9 = arith.constant 0.000000e+00 : f32
    %34 = vector.broadcast %cst_9 : f32 to vector<1x128xf32>
    %35 = arith.select %33, %27, %34 : vector<1x128xi1>, vector<1x128xf32>
    %cst_10 = arith.constant dense<0.000000e+00> : vector<1xf32>
    %36 = vector.multi_reduction <add>, %35, %cst_10 [1] : vector<1x128xf32> to vector<1xf32>
    %37 = vector.shape_cast %36 : vector<1xf32> to vector<1x1xf32>
    %38 = vector.shape_cast %37 : vector<1x1xf32> to vector<1x1x1xf32>
    %39 = vector.shape_cast %38 : vector<1x1x1xf32> to vector<1x1x1xf32>
    %40 = vector.broadcast %39 : vector<1x1x1xf32> to vector<1x1x128xf32>
    %c0_11 = arith.constant 0 : index
    %c0_12 = arith.constant 0 : index
    %c0_13 = arith.constant 0 : index
    %41 = vector.load %arg3[%c0_11, %c0_12, %c0_13] : memref<1x1x128xf32, #tpu.memory_space<vmem>>, vector<1x1x128xf32>
    tpu.vector_store %arg3[%c0_11, %c0_12, %c0_13], %40 {strides = array<i32>} : memref<1x1x128xf32, #tpu.memory_space<vmem>>, vector<1x1x128xf32>,
    return
  }
  func.func @transform_0(%arg0: i32) -> (i32, i32) {
    %c0_i32 = arith.constant 0 : i32
    %c0_i32_0 = arith.constant 0 : i32
    return %c0_i32, %arg0 : i32, i32
  }
  func.func @transform_1(%arg0: i32) -> (i32, i32) {
    %c0_i32 = arith.constant 0 : i32
    %c0_i32_0 = arith.constant 0 : i32
    return %c0_i32, %arg0 : i32, i32
  }
  func.func @transform_2(%arg0: i32) -> (i32, i32, i32) {
    %c0_i32 = arith.constant 0 : i32
    %c0_i32_0 = arith.constant 0 : i32
    %c0_i32_1 = arith.constant 0 : i32
    return %arg0, %c0_i32, %c0_i32_0 : i32, i32, i32
  }
}

</mosaic_0001>

<llo_original>
// kernel: tpu_custom_call.1
$region0: #{tpu_custom_call.1}
  #allocation0 [shape = 'u32[]', space=smem, size = 0x4, offset = 0x4, fixed_abs, tag = 'smem constant byte address 0x4 - core index']
  #allocation1 [shape = 'u32[144,128]{1,0:T(1,128)}', space=vmem, size = 0x12000, scoped, tag = 'internal scratch']
  %s0 = inlined_call_operand.vmem [shape: f32[10,8], index: 0, kind: input, shape index: {}]
  %s1 = inlined_call_operand.vmem [shape: s32[1,8], index: 1, kind: input, shape index: {}]
  %s2 = inlined_call_operand.hbm [shape: f32[1,1,128], index: 2, kind: output, shape index: {}]
  %s3 = sld [smem:[#allocation0]]
  $region18: #{tpu_custom_call.1} parent=0
    _
  %s5 = ssub.s32 1, %s3
  %s6 = scalar_select 0, %s5, %s3
  $region1: #{tpu_custom_call.1} parent=0
    #allocation2 [shape = 'u8[512]{0}', space=vmem, size = 0x400, scoped, tag = 'output window, operand 0, single buffered']
    #allocation3 [shape = 's32[1]{0}', space=sflag, size = 0x4, scoped, tag = 'scoped memory for tpu_custom_call.1']
    %7 = vsyncpa [#allocation3], 0
    // Predicated region
    $region2: #{tpu_custom_call.1} parent=1 // pred_check
      _
    $region3: #{tpu_custom_call.1} parent=1 // pred_check_branch
      %9 = sbr.rel (0) target = $region5
    $region4: #{tpu_custom_call.1} parent=1 // pred_region
      _
    $region5: #{tpu_custom_call.1} parent=1 // pred_fallthru
      _
    // Predicated region
    $region6: #{tpu_custom_call.1} parent=1 // pred_check
      _
    $region7: #{tpu_custom_call.1} parent=1 // pred_check_branch
      %11 = sbr.rel (0) target = $region9
    $region8: #{tpu_custom_call.1} parent=1 // pred_region
      _
    $region9: #{tpu_custom_call.1} parent=1 // pred_fallthru
      _
    %v12 = vld [vmem:[%s0] sm:$0xff]
    %v13 = vld [vmem:[%s0 + $0x8] sm:$0x3]
    %v14 = vld [vmem:[%s1] sm:$0x1]
    %vm15 = vcmask 1041408
    %v16 = vsel %vm15, %v13, -inf
    %v17 = vmax.f32 %v12, %v16
    %v18 = vrot.slane %v17, 4
    %v19 = vmax.f32 %v17, %v18
    %v20 = vrot.slane %v19, 2
    %v21 = vmax.f32 %v19, %v20
    %v22 = vrot.slane %v21, 1
    %v23 = vmax.f32 %v21, %v22
    %v24 = vsub.f32 %v12, %v23
    %v25 = vsub.f32 %v13, %v23
    %v26 = vmul.f32 %v24, 1.442695
    %v27 = vpow.pop %v26
    %v28 = vmul.f32 %v25, 1.442695
    %v29 = vpow.pop %v28
    %v30 = vsel %vm15, %v29, 0.0
    %v31 = vadd.f32 %v27, %v30
    %v32 = vrot.slane %v31, 4
    %v33 = vadd.f32 %v31, %v32
    %v34 = vrot.slane %v33, 2
    %v35 = vadd.f32 %v33, %v34
    %v36 = vrot.slane %v35, 1
    %v37 = vadd.f32 %v35, %v36
    %v38 = vlog2.pop %v37
    %v39 = vmul.f32 %v38, 0.6931472
    %v40 = vlaneseq
    %v41 = vshrl.u32 %v40, 7
    %v42 = vadd.s32 %v41, 8
    %v43 = vlaneseq
    %v44 = vshrl.u32 %v43, 7
    %v45 = vsub.s32 0, %v44
    %v46 = vrot.slane %v14, %v45
    %vm47 = vcmp.eq.s32.totalorder %v41, %v46
    %vm48 = vcmp.eq.s32.totalorder %v42, %v46
    %v49 = vsel %vm47, %v24, 0.0
    %v50 = vsel %vm48, %v25, 0.0
    %v51 = vsel %vm15, %v50, 0.0
    %v52 = vadd.f32 %v49, %v51
    %v53 = vrot.slane %v52, 4
    %v54 = vadd.f32 %v52, %v53
    %v55 = vrot.slane %v54, 2
    %v56 = vadd.f32 %v54, %v55
    %v57 = vrot.slane %v56, 1
    %v58 = vadd.f32 %v56, %v57
    %v59 = vsub.f32 %v58, %v39
    %v60 = vsub.f32 %v39, %v24
    %v61 = vsub.f32 %v39, %v25
    %v62 = vsel %vm15, %v61, 0.0
    %v63 = vadd.f32 %v60, %v62
    %v64 = vrot.slane %v63, 4
    %v65 = vadd.f32 %v63, %v64
    %v66 = vrot.slane %v65, 2
    %v67 = vadd.f32 %v65, %v66
    %v68 = vrot.slane %v67, 1
    %v69 = vadd.f32 %v67, %v68
    %v70 = vsub.f32 0.0, %v59
    %v71 = vrcp.pop %v69
    %v72 = vmul.f32 %v70, %v71
    %v73 = vlaneseq
    %v74 = vand.u32 %v73, 127
    %s75 = smul.u32 0, 128
    %v76 = vstv %s75
    %v77 = vadd.s32 %v74, %v76
    %vm78 = vcmp.lt.s32.totalorder %v77, 8
    %v79 = vsel %vm78, %v72, 0.0
    %80 = vadd.xlane.f32.xlu0 %v79
    %v81 = vpop.xlane.xlu0 %80
    %82 = vst [vmem:[#allocation2] sm:$0x1] %v81
    // Predicated region
    $region10: #{tpu_custom_call.1} parent=1 // pred_check
      _
    $region11: #{tpu_custom_call.1} parent=1 // pred_check_branch
      %84 = sbr.rel (0) target = $region13
    $region12: #{tpu_custom_call.1} parent=1 // pred_region
      %s86 = ssub.s32 16, 16
      %87 = vsyncadd [#allocation3], %s86
      %s89 = sshll.u32 [#allocation2], 4
      %s90 = int_to_ptr.vmem [resolvable:$true] %s89
      %92 = dma.vmem_to_hbm [thread:$0]  %s90, 16, %s2, [#allocation3]
    $region13: #{tpu_custom_call.1} parent=1 // pred_fallthru
      _
    // Predicated region
    $region14: #{tpu_custom_call.1} parent=1 // pred_check
      _
    $region15: #{tpu_custom_call.1} parent=1 // pred_check_branch
      %94 = sbr.rel (0) target = $region17
    $region16: #{tpu_custom_call.1} parent=1 // pred_region
      %95 = dma.done [#allocation3], 16
    $region17: #{tpu_custom_call.1} parent=1 // pred_fallthru
      _
    %96 = vsyncpa [#allocation3], 1

</llo_original>
